<compile_context>
chip_gen: v6e
topology: v6e:2x2x1
jax: 0.10.0
libtpu: 0.0.40
codegen_flags: <defaults>
</compile_context>

<pallas_src>
import jax
import jax.numpy as jnp
from jax.experimental import pallas as pl
from jax.experimental.pallas import tpu as pltpu


# ---------------------------------------------------------------------------
# Kernel: fused twin-MLP, one batch tile per grid step.
# ---------------------------------------------------------------------------
def _critic_kernel(s_ref, a_ref,
                   w1s_ref, w1a_ref, b1_ref,
                   w2a_ref, w2b_ref, b2_ref,
                   w3_ref, b3_ref,
                   w4_ref, b4_ref,
                   out_ref):
    # In-kernel bf16 cast of the (tiny-K) f32 inputs.
    s = s_ref[...].astype(jnp.bfloat16)
    a = a_ref[...].astype(jnp.bfloat16)

    # Layer 1: states @ W1_s + actions @ W1_a + b1  (fused twin layer, N=512)
    h = (jnp.dot(s, w1s_ref[...], preferred_element_type=jnp.float32)
         + jnp.dot(a, w1a_ref[...], preferred_element_type=jnp.float32)
         + b1_ref[...])
    h = jnp.maximum(h, 0.0).astype(jnp.bfloat16)

    # Layer 2: two dense per-net 256x256 matmuls on 128-lane-aligned slices
    # (replaces the zero-padded 512x512 block-diagonal form).
    h2 = jnp.concatenate(
        [jnp.dot(h[:, :256], w2a_ref[...], preferred_element_type=jnp.float32),
         jnp.dot(h[:, 256:], w2b_ref[...], preferred_element_type=jnp.float32)],
        axis=-1) + b2_ref[...]
    h2 = jnp.maximum(h2, 0.0)

    # Layer 3: block-diagonal (512 x 128)
    h3 = jnp.dot(h2.astype(jnp.bfloat16), w3_ref[...],
                 preferred_element_type=jnp.float32) + b3_ref[...]
    h3 = jnp.maximum(h3, 0.0)

    # Layer 4: block-diagonal, padded to 128 output lanes -> unmasked vst.
    out_ref[...] = jnp.dot(h3.astype(jnp.bfloat16), w4_ref[...],
                           preferred_element_type=jnp.float32) + b4_ref[...]


# ---------------------------------------------------------------------------
# Parameter construction (mirrors the PyTorch module) + one-time repack.
# ---------------------------------------------------------------------------
def make_critic_params(key, state_dim, action_dim):
    """Raw per-net f32 params matching the PyTorch CriticNetwork.

    Weights: kaiming-normal (std = sqrt(2 / fan_in)), as in init_weights().
    Biases : uniform(-1/sqrt(fan_in), 1/sqrt(fan_in)) (nn.Linear default).
    Layout : W is [in_features, out_features] (x @ W + b == torch x @ W.T + b).
    Returns [w1a,b1a,...,w4a,b4a, w1b,b1b,...,w4b,b4b].
    """
    in_dim = state_dim + action_dim
    dims = [(in_dim, 256), (256, 256), (256, 64), (64, 1)]
    params = []
    for _net in range(2):
        for fan_in, fan_out in dims:
            key, kw, kb = jax.random.split(key, 3)
            w = jax.random.normal(kw, (fan_in, fan_out), jnp.float32) * jnp.sqrt(2.0 / fan_in)
            bound = 1.0 / jnp.sqrt(float(fan_in))
            b = jax.random.uniform(kb, (1, fan_out), jnp.float32, -bound, bound)
            params.append(w)
            params.append(b)
    return params


def pack_critic_params(raw, state_dim):
    """One-time repack of the twin nets into fused / block-diagonal weights.

    Done once outside the kernel.  Weights -> bf16, biases stay f32.
    Returns (w1s, w1a, b1, w2a, w2b, b2, w3, b3, w4, b4).
    """
    (w1a_, b1a_, w2a_, b2a_, w3a_, b3a_, w4a_, b4a_,
     w1b_, b1b_, w2b_, b2b_, w3b_, b3b_, w4b_, b4b_) = raw

    def bdiag(x, y):
        return jnp.block(
            [[x, jnp.zeros((x.shape[0], y.shape[1]), x.dtype)],
             [jnp.zeros((y.shape[0], x.shape[1]), y.dtype), y]])

    w1 = jnp.concatenate([w1a_, w1b_], axis=1)          # (in_dim, 512) -- exact fuse
    b1 = jnp.concatenate([b1a_, b1b_], axis=1)          # (1, 512)
    # Layer 2: kept as two dense per-net weights (no block-diagonal zeros).
    w2a, w2b = w2a_, w2b_                                # (256, 256) each
    b2 = jnp.concatenate([b2a_, b2b_], axis=1)           # (1, 512)
    w3 = bdiag(w3a_, w3b_)                               # (512, 128)
    b3 = jnp.concatenate([b3a_, b3b_], axis=1)           # (1, 128)
    w4 = bdiag(w4a_, w4b_)                                # (128, 2)
    b4 = jnp.concatenate([b4a_, b4b_], axis=1)            # (1, 2)
    # Pad final layer to 128 output lanes: lane-dense, unmasked output store.
    w4 = jnp.pad(w4, ((0, 0), (0, 128 - w4.shape[1])))
    b4 = jnp.pad(b4, ((0, 0), (0, 128 - b4.shape[1])))

    # Split layer-1 rows so the kernel can skip the states/actions concat.
    w1s, w1a = w1[:state_dim], w1[state_dim:]

    bf = lambda w: w.astype(jnp.bfloat16)
    return (bf(w1s), bf(w1a), b1, bf(w2a), bf(w2b), b2, bf(w3), b3, bf(w4), b4)


# ---------------------------------------------------------------------------
# Wrapper
# ---------------------------------------------------------------------------
def critic_forward(states, actions, packed):
    """Returns (q1, q2), each (B, 1) f32 -- same semantics as the torch module."""
    B, state_dim = states.shape
    action_dim = actions.shape[1]
    in_dim = state_dim + action_dim

    # Single block for typical SAC batch sizes: the kernel is latency/DMA-bound
    # and its whole working set is a few MiB, far under VMEM on every
    # generation (incl. v7x's 64 MiB).  Only tile for very large batches, with
    # TB a multiple of the 256x256 v6e/v7x MXU tile, and only then mark the
    # batch axis "parallel" (so small batches never pay duplicated weight DMA
    # across the two v7x TensorCores).
    if B <= 1024:
        TB = B
        grid = (1,)
        semantics = ("arbitrary",)
    else:
        TB = 512
        grid = (pl.cdiv(B, TB),)
        semantics = ("parallel",)

    in_specs = [
        pl.BlockSpec((TB, state_dim), lambda i: (i, 0)),
        pl.BlockSpec((TB, action_dim), lambda i: (i, 0)),
    ] + [pl.BlockSpec(p.shape, lambda i: (0, 0)) for p in packed]

    # Real cost of the fused forward pass (hint for the XLA scheduler).
    flops = 2 * B * (in_dim * 512 + 256 * 512 + 512 * 128 + 128 * 128)
    bytes_accessed = (B * in_dim * 4 + B * 128 * 4
                      + sum(int(p.size) * p.dtype.itemsize for p in packed))
    cost = pl.CostEstimate(flops=int(flops), transcendentals=0,
                           bytes_accessed=int(bytes_accessed))

    out = pl.pallas_call(
        _critic_kernel,
        grid=grid,
        out_shape=jax.ShapeDtypeStruct((B, 128), jnp.float32),
        in_specs=in_specs,
        out_specs=pl.BlockSpec((TB, 128), lambda i: (i, 0)),
        compiler_params=pltpu.CompilerParams(dimension_semantics=semantics),
        cost_estimate=cost,
    )(states, actions, *packed)

    q1 = out[:B, 0:1]
    q2 = out[:B, 1:2]
    return q1, q2


# ---------------------------------------------------------------------------
# Pure-JAX reference (same bf16-input / f32-accumulate numerics as the kernel)
# ---------------------------------------------------------------------------
def _reference_forward(states, actions, raw):
    x = jnp.concatenate([states, actions], axis=-1).astype(jnp.float32)

    def net(p):
        h = x
        for i in range(3):
            h = jnp.maximum(
                jnp.dot(h.astype(jnp.bfloat16), p[2 * i].astype(jnp.bfloat16),
                        preferred_element_type=jnp.float32) + p[2 * i + 1],
                0.0)
        return jnp.dot(h.astype(jnp.bfloat16), p[6].astype(jnp.bfloat16),
                       preferred_element_type=jnp.float32) + p[7]

    return net(raw[:8]), net(raw[8:])


if __name__ == "__main__":
    key = jax.random.PRNGKey(0)
    k_s, k_a, k_p, k_s2, k_a2, k_s3, k_a3 = jax.random.split(key, 7)

    state_dim = 16
    action_dim = 4  # action_shape[0]

    raw_params = make_critic_params(k_p, state_dim, action_dim)
    packed = pack_critic_params(raw_params, state_dim)

    # --- small-batch check (single grid step, full-array blocks) ---
    B = 2
    states = jax.random.normal(k_s, (B, state_dim), jnp.float32)
    actions = jax.random.normal(k_a, (B, action_dim), jnp.float32)

    q1, q2 = critic_forward(states, actions, packed)
    jax.block_until_ready((q1, q2))

    r1, r2 = _reference_forward(states, actions, raw_params)
    assert q1.shape == (B, 1) and q2.shape == (B, 1)
    assert jnp.allclose(q1, r1, atol=5e-2, rtol=5e-2)
    assert jnp.allclose(q2, r2, atol=5e-2, rtol=5e-2)

    # --- realistic SAC batch, non-multiple-of-8 rows (still one grid step) ---
    B2 = 300
    states2 = jax.random.normal(k_s2, (B2, state_dim), jnp.float32)
    actions2 = jax.random.normal(k_a2, (B2, action_dim), jnp.float32)

    p1, p2 = critic_forward(states2, actions2, packed)
    jax.block_until_ready((p1, p2))

    rr1, rr2 = _reference_forward(states2, actions2, raw_params)
    assert p1.shape == (B2, 1) and p2.shape == (B2, 1)
    assert jnp.allclose(p1, rr1, atol=5e-2, rtol=5e-2)
    assert jnp.allclose(p2, rr2, atol=5e-2, rtol=5e-2)

    # --- very large batch: exercises the tiled, batch-parallel (megacore) path ---
    B3 = 2048
    states3 = jax.random.normal(k_s3, (B3, state_dim), jnp.float32)
    actions3 = jax.random.normal(k_a3, (B3, action_dim), jnp.float32)

    t1, t2 = critic_forward(states3, actions3, packed)
    jax.block_until_ready((t1, t2))

    tt1, tt2 = _reference_forward(states3, actions3, raw_params)
    assert t1.shape == (B3, 1) and t2.shape == (B3, 1)
    assert jnp.allclose(t1, tt1, atol=5e-2, rtol=5e-2)
    assert jnp.allclose(t2, tt2, atol=5e-2, rtol=5e-2)

    print("KERNEL_OK")
</pallas_src>

<mosaic_0001>
module attributes {stable_mosaic.version = 11 : i64} {
  func.func @_critic_kernel(%arg0: i32, %arg1: memref<2x16xf32, #tpu.memory_space<vmem>>, %arg2: memref<2x4xf32, #tpu.memory_space<vmem>>, %arg3: memref<16x512xbf16, #tpu.memory_space<vmem>>, %arg4: memref<4x512xbf16, #tpu.memory_space<vmem>>, %arg5: memref<1x512xf32, #tpu.memory_space<vmem>>, %arg6: memref<256x256xbf16, #tpu.memory_space<vmem>>, %arg7: memref<256x256xbf16, #tpu.memory_space<vmem>>, %arg8: memref<1x512xf32, #tpu.memory_space<vmem>>, %arg9: memref<512x128xbf16, #tpu.memory_space<vmem>>, %arg10: memref<1x128xf32, #tpu.memory_space<vmem>>, %arg11: memref<128x128xbf16, #tpu.memory_space<vmem>>, %arg12: memref<1x128xf32, #tpu.memory_space<vmem>>, %arg13: memref<2x128xf32, #tpu.memory_space<vmem>>) attributes {dimension_semantics = [#tpu.dimension_semantics<arbitrary>], iteration_bounds = array<i64: 1>, scalar_prefetch = 0 : i64, scratch_operands = 0 : i64, tpu.core_type = #tpu.core_type<tc>, window_params = [{transform_indices = @transform_0, window_bounds = array<i64: 2, 16>}, {transform_indices = @transform_1, window_bounds = array<i64: 2, 4>}, {pipeline_mode = #tpu.pipeline_mode<synchronous>, transform_indices = @transform_2, window_bounds = array<i64: 16, 512>}, {pipeline_mode = #tpu.pipeline_mode<synchronous>, transform_indices = @transform_3, window_bounds = array<i64: 4, 512>}, {pipeline_mode = #tpu.pipeline_mode<synchronous>, transform_indices = @transform_4, window_bounds = array<i64: 1, 512>}, {pipeline_mode = #tpu.pipeline_mode<synchronous>, transform_indices = @transform_5, window_bounds = array<i64: 256, 256>}, {pipeline_mode = #tpu.pipeline_mode<synchronous>, transform_indices = @transform_6, window_bounds = array<i64: 256, 256>}, {pipeline_mode = #tpu.pipeline_mode<synchronous>, transform_indices = @transform_7, window_bounds = array<i64: 1, 512>}, {pipeline_mode = #tpu.pipeline_mode<synchronous>, transform_indices = @transform_8, window_bounds = array<i64: 512, 128>}, {pipeline_mode = #tpu.pipeline_mode<synchronous>, transform_indices = @transform_9, window_bounds = array<i64: 1, 128>}, {pipeline_mode = #tpu.pipeline_mode<synchronous>, transform_indices = @transform_10, window_bounds = array<i64: 128, 128>}, {pipeline_mode = #tpu.pipeline_mode<synchronous>, transform_indices = @transform_11, window_bounds = array<i64: 1, 128>}, {transform_indices = @transform_12, window_bounds = array<i64: 2, 128>}]} {
    %c0 = arith.constant 0 : index
    %c0_0 = arith.constant 0 : index
    %0 = vector.load %arg1[%c0, %c0_0] : memref<2x16xf32, #tpu.memory_space<vmem>>, vector<2x16xf32>
    %1 = arith.truncf %0 : vector<2x16xf32> to vector<2x16xbf16>
    %c0_1 = arith.constant 0 : index
    %c0_2 = arith.constant 0 : index
    %2 = vector.load %arg2[%c0_1, %c0_2] : memref<2x4xf32, #tpu.memory_space<vmem>>, vector<2x4xf32>
    %3 = arith.truncf %2 : vector<2x4xf32> to vector<2x4xbf16>
    %c0_3 = arith.constant 0 : index
    %c0_4 = arith.constant 0 : index
    %4 = vector.load %arg3[%c0_3, %c0_4] : memref<16x512xbf16, #tpu.memory_space<vmem>>, vector<16x512xbf16>
    %cst = arith.constant dense<0.000000e+00> : vector<2x512xf32>
    %5 = tpu.matmul %1, %4, %cst {dimension_numbers = #tpu.dot_dimension_numbers<[1], [0], [0], [1], [0, 0, 1, 1], [], []>} : vector<2x16xbf16>, vector<16x512xbf16>, vector<2x512xf32> -> vector<2x512xf32>
    %c0_5 = arith.constant 0 : index
    %c0_6 = arith.constant 0 : index
    %6 = vector.load %arg4[%c0_5, %c0_6] : memref<4x512xbf16, #tpu.memory_space<vmem>>, vector<4x512xbf16>
    %cst_7 = arith.constant dense<0.000000e+00> : vector<2x512xf32>
    %7 = tpu.matmul %3, %6, %cst_7 {dimension_numbers = #tpu.dot_dimension_numbers<[1], [0], [0], [1], [0, 0, 1, 1], [], []>} : vector<2x4xbf16>, vector<4x512xbf16>, vector<2x512xf32> -> vector<2x512xf32>
    %8 = arith.addf %5, %7 : vector<2x512xf32>
    %c0_8 = arith.constant 0 : index
    %c0_9 = arith.constant 0 : index
    %9 = vector.load %arg5[%c0_8, %c0_9] : memref<1x512xf32, #tpu.memory_space<vmem>>, vector<1x512xf32>
    %10 = vector.broadcast %9 : vector<1x512xf32> to vector<2x512xf32>
    %11 = arith.addf %8, %10 : vector<2x512xf32>
    %cst_10 = arith.constant 0.000000e+00 : f32
    %12 = vector.broadcast %cst_10 : f32 to vector<2x512xf32>
    %13 = arith.maximumf %11, %12 : vector<2x512xf32>
    %14 = arith.truncf %13 : vector<2x512xf32> to vector<2x512xbf16>
    %15 = vector.extract_strided_slice %14 {offsets = [0, 0], sizes = [2, 256], strides = [1, 1]} : vector<2x512xbf16> to vector<2x256xbf16>
    %c0_11 = arith.constant 0 : index
    %c0_12 = arith.constant 0 : index
    %16 = vector.load %arg6[%c0_11, %c0_12] : memref<256x256xbf16, #tpu.memory_space<vmem>>, vector<256x256xbf16>
    %cst_13 = arith.constant dense<0.000000e+00> : vector<2x256xf32>
    %17 = tpu.matmul %15, %16, %cst_13 {dimension_numbers = #tpu.dot_dimension_numbers<[1], [0], [0], [1], [0, 0, 1, 1], [], []>} : vector<2x256xbf16>, vector<256x256xbf16>, vector<2x256xf32> -> vector<2x256xf32>
    %18 = vector.extract_strided_slice %14 {offsets = [0, 256], sizes = [2, 256], strides = [1, 1]} : vector<2x512xbf16> to vector<2x256xbf16>
    %c0_14 = arith.constant 0 : index
    %c0_15 = arith.constant 0 : index
    %19 = vector.load %arg7[%c0_14, %c0_15] : memref<256x256xbf16, #tpu.memory_space<vmem>>, vector<256x256xbf16>
    %cst_16 = arith.constant dense<0.000000e+00> : vector<2x256xf32>
    %20 = tpu.matmul %18, %19, %cst_16 {dimension_numbers = #tpu.dot_dimension_numbers<[1], [0], [0], [1], [0, 0, 1, 1], [], []>} : vector<2x256xbf16>, vector<256x256xbf16>, vector<2x256xf32> -> vector<2x256xf32>
    %21 = tpu.concatenate %17, %20 in 1 : vector<2x256xf32>, vector<2x256xf32> -> vector<2x512xf32>
    %c0_17 = arith.constant 0 : index
    %c0_18 = arith.constant 0 : index
    %22 = vector.load %arg8[%c0_17, %c0_18] : memref<1x512xf32, #tpu.memory_space<vmem>>, vector<1x512xf32>
    %23 = vector.broadcast %22 : vector<1x512xf32> to vector<2x512xf32>
    %24 = arith.addf %21, %23 : vector<2x512xf32>
    %cst_19 = arith.constant 0.000000e+00 : f32
    %25 = vector.broadcast %cst_19 : f32 to vector<2x512xf32>
    %26 = arith.maximumf %24, %25 : vector<2x512xf32>
    %27 = arith.truncf %26 : vector<2x512xf32> to vector<2x512xbf16>
    %c0_20 = arith.constant 0 : index
    %c0_21 = arith.constant 0 : index
    %28 = vector.load %arg9[%c0_20, %c0_21] : memref<512x128xbf16, #tpu.memory_space<vmem>>, vector<512x128xbf16>
    %cst_22 = arith.constant dense<0.000000e+00> : vector<2x128xf32>
    %29 = tpu.matmul %27, %28, %cst_22 {dimension_numbers = #tpu.dot_dimension_numbers<[1], [0], [0], [1], [0, 0, 1, 1], [], []>} : vector<2x512xbf16>, vector<512x128xbf16>, vector<2x128xf32> -> vector<2x128xf32>
    %c0_23 = arith.constant 0 : index
    %c0_24 = arith.constant 0 : index
    %30 = vector.load %arg10[%c0_23, %c0_24] : memref<1x128xf32, #tpu.memory_space<vmem>>, vector<1x128xf32>
    %31 = vector.broadcast %30 : vector<1x128xf32> to vector<2x128xf32>
    %32 = arith.addf %29, %31 : vector<2x128xf32>
    %cst_25 = arith.constant 0.000000e+00 : f32
    %33 = vector.broadcast %cst_25 : f32 to vector<2x128xf32>
    %34 = arith.maximumf %32, %33 : vector<2x128xf32>
    %35 = arith.truncf %34 : vector<2x128xf32> to vector<2x128xbf16>
    %c0_26 = arith.constant 0 : index
    %c0_27 = arith.constant 0 : index
    %36 = vector.load %arg11[%c0_26, %c0_27] : memref<128x128xbf16, #tpu.memory_space<vmem>>, vector<128x128xbf16>
    %cst_28 = arith.constant dense<0.000000e+00> : vector<2x128xf32>
    %37 = tpu.matmul %35, %36, %cst_28 {dimension_numbers = #tpu.dot_dimension_numbers<[1], [0], [0], [1], [0, 0, 1, 1], [], []>} : vector<2x128xbf16>, vector<128x128xbf16>, vector<2x128xf32> -> vector<2x128xf32>
    %c0_29 = arith.constant 0 : index
    %c0_30 = arith.constant 0 : index
    %38 = vector.load %arg12[%c0_29, %c0_30] : memref<1x128xf32, #tpu.memory_space<vmem>>, vector<1x128xf32>
    %39 = vector.broadcast %38 : vector<1x128xf32> to vector<2x128xf32>
    %40 = arith.addf %37, %39 : vector<2x128xf32>
    %c0_31 = arith.constant 0 : index
    %c0_32 = arith.constant 0 : index
    %41 = vector.load %arg13[%c0_31, %c0_32] : memref<2x128xf32, #tpu.memory_space<vmem>>, vector<2x128xf32>
    tpu.vector_store %arg13[%c0_31, %c0_32], %40 {strides = array<i32>} : memref<2x128xf32, #tpu.memory_space<vmem>>, vector<2x128xf32>,
    return
  }
  func.func @transform_0(%arg0: i32) -> (i32, i32) {
    %c0_i32 = arith.constant 0 : i32
    %c0_i32_0 = arith.constant 0 : i32
    return %arg0, %c0_i32 : i32, i32
  }
  func.func @transform_1(%arg0: i32) -> (i32, i32) {
    %c0_i32 = arith.constant 0 : i32
    %c0_i32_0 = arith.constant 0 : i32
    return %arg0, %c0_i32 : i32, i32
  }
  func.func @transform_2(%arg0: i32) -> (i32, i32) {
    %c0_i32 = arith.constant 0 : i32
    %c0_i32_0 = arith.constant 0 : i32
    %c0_i32_1 = arith.constant 0 : i32
    return %c0_i32, %c0_i32_0 : i32, i32
  }
  func.func @transform_3(%arg0: i32) -> (i32, i32) {
    %c0_i32 = arith.constant 0 : i32
    %c0_i32_0 = arith.constant 0 : i32
    %c0_i32_1 = arith.constant 0 : i32
    return %c0_i32, %c0_i32_0 : i32, i32
  }
  func.func @transform_4(%arg0: i32) -> (i32, i32) {
    %c0_i32 = arith.constant 0 : i32
    %c0_i32_0 = arith.constant 0 : i32
    %c0_i32_1 = arith.constant 0 : i32
    return %c0_i32, %c0_i32_0 : i32, i32
  }
  func.func @transform_5(%arg0: i32) -> (i32, i32) {
    %c0_i32 = arith.constant 0 : i32
    %c0_i32_0 = arith.constant 0 : i32
    %c0_i32_1 = arith.constant 0 : i32
    return %c0_i32, %c0_i32_0 : i32, i32
  }
  func.func @transform_6(%arg0: i32) -> (i32, i32) {
    %c0_i32 = arith.constant 0 : i32
    %c0_i32_0 = arith.constant 0 : i32
    %c0_i32_1 = arith.constant 0 : i32
    return %c0_i32, %c0_i32_0 : i32, i32
  }
  func.func @transform_7(%arg0: i32) -> (i32, i32) {
    %c0_i32 = arith.constant 0 : i32
    %c0_i32_0 = arith.constant 0 : i32
    %c0_i32_1 = arith.constant 0 : i32
    return %c0_i32, %c0_i32_0 : i32, i32
  }
  func.func @transform_8(%arg0: i32) -> (i32, i32) {
    %c0_i32 = arith.constant 0 : i32
    %c0_i32_0 = arith.constant 0 : i32
    %c0_i32_1 = arith.constant 0 : i32
    return %c0_i32, %c0_i32_0 : i32, i32
  }
  func.func @transform_9(%arg0: i32) -> (i32, i32) {
    %c0_i32 = arith.constant 0 : i32
    %c0_i32_0 = arith.constant 0 : i32
    %c0_i32_1 = arith.constant 0 : i32
    return %c0_i32, %c0_i32_0 : i32, i32
  }
  func.func @transform_10(%arg0: i32) -> (i32, i32) {
    %c0_i32 = arith.constant 0 : i32
    %c0_i32_0 = arith.constant 0 : i32
    %c0_i32_1 = arith.constant 0 : i32
    return %c0_i32, %c0_i32_0 : i32, i32
  }
  func.func @transform_11(%arg0: i32) -> (i32, i32) {
    %c0_i32 = arith.constant 0 : i32
    %c0_i32_0 = arith.constant 0 : i32
    %c0_i32_1 = arith.constant 0 : i32
    return %c0_i32, %c0_i32_0 : i32, i32
  }
  func.func @transform_12(%arg0: i32) -> (i32, i32) {
    %c0_i32 = arith.constant 0 : i32
    %c0_i32_0 = arith.constant 0 : i32
    return %arg0, %c0_i32 : i32, i32
  }
}

</mosaic_0001>

<llo_original>
// kernel: tpu_custom_call.1
$region0: #{tpu_custom_call.1}
  #allocation0 [shape = 'u32[]', space=smem, size = 0x4, offset = 0x4, fixed_abs, tag = 'smem constant byte address 0x4 - core index']
  #allocation1 [shape = 'u32[144,128]{1,0:T(1,128)}', space=vmem, size = 0x12000, scoped, tag = 'internal scratch']
  %s0 = inlined_call_operand.hbm [shape: f32[2,16], index: 0, kind: input, shape index: {}]
  %s1 = inlined_call_operand.hbm [shape: f32[2,4], index: 1, kind: input, shape index: {}]
  %s2 = inlined_call_operand.hbm [shape: bf16[16,512], index: 2, kind: input, shape index: {}]
  %s3 = inlined_call_operand.hbm [shape: bf16[4,512], index: 3, kind: input, shape index: {}]
  %s4 = inlined_call_operand.vmem [shape: f32[1,512], index: 4, kind: input, shape index: {}]
  %s5 = inlined_call_operand.hbm [shape: bf16[256,256], index: 5, kind: input, shape index: {}]
  %s6 = inlined_call_operand.hbm [shape: bf16[256,256], index: 6, kind: input, shape index: {}]
  %s7 = inlined_call_operand.vmem [shape: f32[1,512], index: 7, kind: input, shape index: {}]
  %s8 = inlined_call_operand.hbm [shape: bf16[512,128], index: 8, kind: input, shape index: {}]
  %s9 = inlined_call_operand.vmem [shape: f32[1,128], index: 9, kind: input, shape index: {}]
  %s10 = inlined_call_operand.hbm [shape: bf16[128,128], index: 10, kind: input, shape index: {}]
  %s11 = inlined_call_operand.vmem [shape: f32[1,128], index: 11, kind: input, shape index: {}]
  %s12 = inlined_call_operand.hbm [shape: f32[2,128], index: 12, kind: output, shape index: {}]
  %s13 = sld [smem:[#allocation0]]
  $region90: #{tpu_custom_call.1} parent=0
    _
  %s15 = ssub.s32 1, %s13
  %s16 = scalar_select 0, %s15, %s13
  $region1: #{tpu_custom_call.1} parent=0
    #allocation2 [shape = 'u8[1024]{0}', space=vmem, size = 0x400, scoped, tag = 'input window, operand 0, single buffered']
    #allocation3 [shape = 's32[1]{0}', space=sflag, size = 0x4, scoped, tag = 'scoped memory for tpu_custom_call.1']
    #allocation4 [shape = 's32[1]{0}', space=sflag, size = 0x4, scoped, tag = 'scoped memory for tpu_custom_call.1']
    #allocation5 [shape = 'u8[1024]{0}', space=vmem, size = 0x400, scoped, tag = 'input window, operand 1, single buffered']
    #allocation6 [shape = 's32[1]{0}', space=sflag, size = 0x4, scoped, tag = 'scoped memory for tpu_custom_call.1']
    #allocation7 [shape = 'u8[16384]{0}', space=vmem, size = 0x4000, scoped, tag = 'input window, operand 2, single buffered']
    #allocation8 [shape = 'u8[4096]{0}', space=vmem, size = 0x1000, scoped, tag = 'input window, operand 3, single buffered']
    #allocation9 [shape = 's32[1]{0}', space=sflag, size = 0x4, scoped, tag = 'scoped memory for tpu_custom_call.1']
    #allocation10 [shape = 'u8[131072]{0}', space=vmem, size = 0x20000, scoped, tag = 'input window, operand 5, single buffered']
    #allocation11 [shape = 'u8[131072]{0}', space=vmem, size = 0x20000, scoped, tag = 'input window, operand 6, single buffered']
    #allocation12 [shape = 's32[1]{0}', space=sflag, size = 0x4, scoped, tag = 'scoped memory for tpu_custom_call.1']
    #allocation13 [shape = 'u8[131072]{0}', space=vmem, size = 0x20000, scoped, tag = 'input window, operand 8, single buffered']
    #allocation14 [shape = 'u8[32768]{0}', space=vmem, size = 0x8000, scoped, tag = 'input window, operand 10, single buffered']
    #allocation15 [shape = 's32[1]{0}', space=sflag, size = 0x4, scoped, tag = 'scoped memory for tpu_custom_call.1']
    #allocation16 [shape = 'u8[1024]{0}', space=vmem, size = 0x400, scoped, tag = 'output window, operand 0, single buffered']
    %17 = vsyncpa [#allocation3], 0
    %18 = vsyncpa [#allocation6], 0
    %19 = vsyncpa [#allocation9], 0
    %20 = vsyncpa [#allocation12], 0
    %21 = vsyncpa [#allocation15], 0
    %22 = vsyncpa [#allocation4], 0
    // Predicated region
    $region2: #{tpu_custom_call.1} parent=1 // pred_check
      _
    $region3: #{tpu_custom_call.1} parent=1 // pred_check_branch
      %24 = sbr.rel (0) target = $region5
    $region4: #{tpu_custom_call.1} parent=1 // pred_region
      %s26 = ssub.s32 32, 32
      %27 = vsyncadd [#allocation3], %s26
      %s29 = sshll.u32 [#allocation2], 4
      %s30 = int_to_ptr.vmem [resolvable:$true] %s29
      %32 = dma.hbm_to_vmem [thread:$0]  %s0, 32, %s30, [#allocation3]
    $region5: #{tpu_custom_call.1} parent=1 // pred_fallthru
      _
    // Predicated region
    $region6: #{tpu_custom_call.1} parent=1 // pred_check
      _
    $region7: #{tpu_custom_call.1} parent=1 // pred_check_branch
      %34 = sbr.rel (0) target = $region9
    $region8: #{tpu_custom_call.1} parent=1 // pred_region
      %s36 = ssub.s32 32, 32
      %37 = vsyncadd [#allocation6], %s36
      %s39 = sshll.u32 [#allocation5], 4
      %s40 = int_to_ptr.vmem [resolvable:$true] %s39
      %42 = dma.hbm_to_vmem [thread:$0]  %s1, 32, %s40, [#allocation6]
    $region9: #{tpu_custom_call.1} parent=1 // pred_fallthru
      _
    // Predicated region
    $region10: #{tpu_custom_call.1} parent=1 // pred_check
      _
    $region11: #{tpu_custom_call.1} parent=1 // pred_check_branch
      %44 = sbr.rel (0) target = $region13
    $region12: #{tpu_custom_call.1} parent=1 // pred_region
      %s46 = ssub.s32 512, 512
      %47 = vsyncadd [#allocation6], %s46
      %s48 = sshll.u32 [#allocation7], 4
      %s49 = int_to_ptr.vmem [resolvable:$true] %s48
      %54 = dma.hbm_to_vmem [thread:$0]  %s2, 512, %s49, [#allocation6], 256, 256, 16
    $region13: #{tpu_custom_call.1} parent=1 // pred_fallthru
      _
    // Predicated region
    $region14: #{tpu_custom_call.1} parent=1 // pred_check
      _
    $region15: #{tpu_custom_call.1} parent=1 // pred_check_branch
      %56 = sbr.rel (0) target = $region17
    $region16: #{tpu_custom_call.1} parent=1 // pred_region
      %s58 = ssub.s32 128, 128
      %59 = vsyncadd [#allocation9], %s58
      %s61 = sshll.u32 [#allocation8], 4
      %s62 = int_to_ptr.vmem [resolvable:$true] %s61
      %64 = dma.hbm_to_vmem [thread:$0]  %s3, 128, %s62, [#allocation9]
    $region17: #{tpu_custom_call.1} parent=1 // pred_fallthru
      _
    // Predicated region
    $region18: #{tpu_custom_call.1} parent=1 // pred_check
      _
    $region19: #{tpu_custom_call.1} parent=1 // pred_check_branch
      %66 = sbr.rel (0) target = $region21
    $region20: #{tpu_custom_call.1} parent=1 // pred_region
      _
    $region21: #{tpu_custom_call.1} parent=1 // pred_fallthru
      _
    // Predicated region
    $region22: #{tpu_custom_call.1} parent=1 // pred_check
      _
    $region23: #{tpu_custom_call.1} parent=1 // pred_check_branch
      %68 = sbr.rel (0) target = $region25
    $region24: #{tpu_custom_call.1} parent=1 // pred_region
      %s70 = ssub.s32 4096, 4096
      %71 = vsyncadd [#allocation9], %s70
      %s72 = sshll.u32 [#allocation10], 4
      %s73 = int_to_ptr.vmem [resolvable:$true] %s72
      %78 = dma.hbm_to_vmem [thread:$0]  %s5, 4096, %s73, [#allocation9], 128, 128, 8
    $region25: #{tpu_custom_call.1} parent=1 // pred_fallthru
      _
    // Predicated region
    $region26: #{tpu_custom_call.1} parent=1 // pred_check
      _
    $region27: #{tpu_custom_call.1} parent=1 // pred_check_branch
      %80 = sbr.rel (0) target = $region29
    $region28: #{tpu_custom_call.1} parent=1 // pred_region
      %s82 = ssub.s32 4096, 4096
      %83 = vsyncadd [#allocation12], %s82
      %s84 = sshll.u32 [#allocation11], 4
      %s85 = int_to_ptr.vmem [resolvable:$true] %s84
      %90 = dma.hbm_to_vmem [thread:$0]  %s6, 4096, %s85, [#allocation12], 128, 128, 8
    $region29: #{tpu_custom_call.1} parent=1 // pred_fallthru
      _
    // Predicated region
    $region30: #{tpu_custom_call.1} parent=1 // pred_check
      _
    $region31: #{tpu_custom_call.1} parent=1 // pred_check_branch
      %92 = sbr.rel (0) target = $region33
    $region32: #{tpu_custom_call.1} parent=1 // pred_region
      _
    $region33: #{tpu_custom_call.1} parent=1 // pred_fallthru
      _
    // Predicated region
    $region34: #{tpu_custom_call.1} parent=1 // pred_check
      _
    $region35: #{tpu_custom_call.1} parent=1 // pred_check_branch
      %94 = sbr.rel (0) target = $region37
    $region36: #{tpu_custom_call.1} parent=1 // pred_region
      %s96 = ssub.s32 4096, 4096
      %97 = vsyncadd [#allocation12], %s96
      %s98 = sshll.u32 [#allocation13], 4
      %s99 = int_to_ptr.vmem [resolvable:$true] %s98
      %104 = dma.hbm_to_vmem [thread:$0]  %s8, 4096, %s99, [#allocation12], 64, 64, 4
    $region37: #{tpu_custom_call.1} parent=1 // pred_fallthru
      _
    // Predicated region
    $region38: #{tpu_custom_call.1} parent=1 // pred_check
      _
    $region39: #{tpu_custom_call.1} parent=1 // pred_check_branch
      %106 = sbr.rel (0) target = $region41
    $region40: #{tpu_custom_call.1} parent=1 // pred_region
      _
    $region41: #{tpu_custom_call.1} parent=1 // pred_fallthru
      _
    // Predicated region
    $region42: #{tpu_custom_call.1} parent=1 // pred_check
      _
    $region43: #{tpu_custom_call.1} parent=1 // pred_check_branch
      %108 = sbr.rel (0) target = $region45
    $region44: #{tpu_custom_call.1} parent=1 // pred_region
      %s110 = ssub.s32 1024, 1024
      %111 = vsyncadd [#allocation15], %s110
      %s112 = sshll.u32 [#allocation14], 4
      %s113 = int_to_ptr.vmem [resolvable:$true] %s112
      %118 = dma.hbm_to_vmem [thread:$0]  %s10, 1024, %s113, [#allocation15], 64, 64, 4
    $region45: #{tpu_custom_call.1} parent=1 // pred_fallthru
      _
    // Predicated region
    $region46: #{tpu_custom_call.1} parent=1 // pred_check
      _
    $region47: #{tpu_custom_call.1} parent=1 // pred_check_branch
      %120 = sbr.rel (0) target = $region49
    $region48: #{tpu_custom_call.1} parent=1 // pred_region
      _
    $region49: #{tpu_custom_call.1} parent=1 // pred_fallthru
      _
    // Predicated region
    $region50: #{tpu_custom_call.1} parent=1 // pred_check
      _
    $region51: #{tpu_custom_call.1} parent=1 // pred_check_branch
      %122 = sbr.rel (0) target = $region53
    $region52: #{tpu_custom_call.1} parent=1 // pred_region
      %123 = dma.done [#allocation3], 32
    $region53: #{tpu_custom_call.1} parent=1 // pred_fallthru
      _
    // Predicated region
    $region54: #{tpu_custom_call.1} parent=1 // pred_check
      _
    $region55: #{tpu_custom_call.1} parent=1 // pred_check_branch
      %125 = sbr.rel (0) target = $region57
    $region56: #{tpu_custom_call.1} parent=1 // pred_region
      %126 = dma.done [#allocation6], 32
    $region57: #{tpu_custom_call.1} parent=1 // pred_fallthru
      _
    // Predicated region
    $region58: #{tpu_custom_call.1} parent=1 // pred_check
      _
    $region59: #{tpu_custom_call.1} parent=1 // pred_check_branch
      %128 = sbr.rel (0) target = $region61
    $region60: #{tpu_custom_call.1} parent=1 // pred_region
      %129 = dma.done [#allocation6], 512
    $region61: #{tpu_custom_call.1} parent=1 // pred_fallthru
      _
    // Predicated region
    $region62: #{tpu_custom_call.1} parent=1 // pred_check
      _
    $region63: #{tpu_custom_call.1} parent=1 // pred_check_branch
      %131 = sbr.rel (0) target = $region65
    $region64: #{tpu_custom_call.1} parent=1 // pred_region
      %132 = dma.done [#allocation9], 128
    $region65: #{tpu_custom_call.1} parent=1 // pred_fallthru
      _
    // Predicated region
    $region66: #{tpu_custom_call.1} parent=1 // pred_check
      _
    $region67: #{tpu_custom_call.1} parent=1 // pred_check_branch
      %134 = sbr.rel (0) target = $region69
    $region68: #{tpu_custom_call.1} parent=1 // pred_region
      %135 = dma.done [#allocation9], 4096
    $region69: #{tpu_custom_call.1} parent=1 // pred_fallthru
      _
    // Predicated region
    $region70: #{tpu_custom_call.1} parent=1 // pred_check
      _
    $region71: #{tpu_custom_call.1} parent=1 // pred_check_branch
      %137 = sbr.rel (0) target = $region73
    $region72: #{tpu_custom_call.1} parent=1 // pred_region
      %138 = dma.done [#allocation12], 4096
    $region73: #{tpu_custom_call.1} parent=1 // pred_fallthru
      _
    // Predicated region
    $region74: #{tpu_custom_call.1} parent=1 // pred_check
      _
    $region75: #{tpu_custom_call.1} parent=1 // pred_check_branch
      %140 = sbr.rel (0) target = $region77
    $region76: #{tpu_custom_call.1} parent=1 // pred_region
      %141 = dma.done [#allocation12], 4096
    $region77: #{tpu_custom_call.1} parent=1 // pred_fallthru
      _
    // Predicated region
    $region78: #{tpu_custom_call.1} parent=1 // pred_check
      _
    $region79: #{tpu_custom_call.1} parent=1 // pred_check_branch
      %143 = sbr.rel (0) target = $region81
    $region80: #{tpu_custom_call.1} parent=1 // pred_region
      %144 = dma.done [#allocation15], 1024
    $region81: #{tpu_custom_call.1} parent=1 // pred_fallthru
      _
    %v146 = vld [vmem:[#allocation2] sm:$0x3]
    %v147 = vpack.c.bf16 %v146, %v146
    %v148 = vld [vmem:[#allocation5] sm:$0x3]
    %v149 = vpack.c.bf16 %v148, %v148
    %v150 = vld [vmem:[#allocation7] sm:$0xff]
    %v151 = vld [vmem:[#allocation7 + $0x8] sm:$0xff]
    %v152 = vld [vmem:[#allocation7 + $0x10] sm:$0xff]
    %v153 = vld [vmem:[#allocation7 + $0x18] sm:$0xff]
    %v154 = vld [vmem:[#allocation8] sm:$0xff]
    %v156 = vcombine.high %v154, %v154
    %v158 = vunpack.c.l.s4 1983009808
    %v159 = vunpack.c.0.s8 %v158
    %v160 = vlaneseq
    %v161 = vshrl.u32 %v160, 7
    %v162 = vsub.s32 %v159, %v161
    %v163 = vrot.slane %v154, %v162
    %v165 = vunpack.c.l.s4 1983009808
    %v166 = vunpack.c.0.s8 %v165
    %v167 = vlaneseq
    %v168 = vshrl.u32 %v167, 7
    %v169 = vsub.s32 %v166, %v168
    %v170 = vrot.slane %v156, %v169
    %v171 = vcombine.high %v163, %v163
    %v172 = vcombine.high %v170, %v170
    %vm173 = vcmask 31744
    %v175 = vsel %vm173, %v149, 0
    %vm177 = vcmask 1041408
    %v179 = vsel %vm177, %v163, 0
    %v182 = vsel %vm177, %v171, 0
    %v185 = vsel %vm177, %v170, 0
    %v188 = vsel %vm177, %v172, 0
    %190 = vmatprep.subr.bf16.mxu0 0
    %191 = vmatpush1.bf16.msra.mxu0 0
    %192 = vmatprep.subr.bf16.mxu0 0
    %193 = vmatpush1.bf16.msra.mxu0 0
    %194 = vmatprep.subr.bf16.mxu0 0
    %195 = vmatpush1.bf16.msra.mxu0 0
    %196 = vmatprep.subr.bf16.mxu0 0
    %197 = vmatpush1.bf16.msra.mxu0 0
    %198 = vmatprep.subr.bf16.mxu0 0
    %199 = vmatpush1.bf16.msra.mxu0 0
    %200 = vmatprep.subr.bf16.mxu0 0
    %201 = vmatpush1.bf16.msra.mxu0 0
    %202 = vmatprep.subr.bf16.mxu0 0
    %203 = vmatpush1.bf16.msra.mxu0 0
    %204 = vmatprep.subr.bf16.mxu0 %v182
    %205 = vmatpush1.bf16.msra.mxu0 %v179
    %206 = vmatprep.subr.bf16.mxu0 0
    %207 = vmatpush2.bf16.msra.mxu0 0
    %208 = vmatprep.subr.bf16.mxu0 0
    %209 = vmatpush2.bf16.msra.mxu0 0
    %210 = vmatprep.subr.bf16.mxu0 0
    %211 = vmatpush2.bf16.msra.mxu0 0
    %212 = vmatprep.subr.bf16.mxu0 0
    %213 = vmatpush2.bf16.msra.mxu0 0
    %214 = vmatprep.subr.bf16.mxu0 0
    %215 = vmatpush2.bf16.msra.mxu0 0
    %216 = vmatprep.subr.bf16.mxu0 0
    %217 = vmatpush2.bf16.msra.mxu0 0
    %218 = vmatprep.subr.bf16.mxu0 0
    %219 = vmatpush2.bf16.msra.mxu0 0
    %220 = vmatprep.subr.bf16.mxu0 0
    %221 = vmatpush2.bf16.msra.mxu0 0
    %222 = vmatprep.mubr.bf16.mxu0 0
    %223 = vmatmul.mubr.bf16.gmra.mxu0 %v175
    %v224 = vpop.f32.mrf.mxu0
    %v225 = vadd.f32 0.0, %v224
    %v226 = vpop.f32.mrf.mxu0
    %v227 = vadd.f32 0.0, %v226
    %v228 = vpop.f32.mrf.mxu0
    %v229 = vpop.f32.mrf.mxu0
    %230 = vdwg.mxu0
    %231 = vmatprep.subr.bf16.mxu0 0
    %232 = vmatpush1.bf16.msra.mxu0 0
    %233 = vmatprep.subr.bf16.mxu0 0
    %234 = vmatpush1.bf16.msra.mxu0 0
    %235 = vmatprep.subr.bf16.mxu0 0
    %236 = vmatpush1.bf16.msra.mxu0 0
    %237 = vmatprep.subr.bf16.mxu0 0
    %238 = vmatpush1.bf16.msra.mxu0 0
    %239 = vmatprep.subr.bf16.mxu0 0
    %240 = vmatpush1.bf16.msra.mxu0 0
    %241 = vmatprep.subr.bf16.mxu0 0
    %242 = vmatpush1.bf16.msra.mxu0 0
    %243 = vmatprep.subr.bf16.mxu0 0
    %244 = vmatpush1.bf16.msra.mxu0 0
    %245 = vmatprep.subr.bf16.mxu0 %v188
    %246 = vmatpush1.bf16.msra.mxu0 %v185
    %247 = vmatprep.subr.bf16.mxu0 0
    %248 = vmatpush2.bf16.msra.mxu0 0
    %249 = vmatprep.subr.bf16.mxu0 0
    %250 = vmatpush2.bf16.msra.mxu0 0
    %251 = vmatprep.subr.bf16.mxu0 0
    %252 = vmatpush2.bf16.msra.mxu0 0
    %253 = vmatprep.subr.bf16.mxu0 0
    %254 = vmatpush2.bf16.msra.mxu0 0
    %255 = vmatprep.subr.bf16.mxu0 0
    %256 = vmatpush2.bf16.msra.mxu0 0
    %257 = vmatprep.subr.bf16.mxu0 0
    %258 = vmatpush2.bf16.msra.mxu0 0
    %259 = vmatprep.subr.bf16.mxu0 0
    %260 = vmatpush2.bf16.msra.mxu0 0
    %261 = vmatprep.subr.bf16.mxu0 0
    %262 = vmatpush2.bf16.msra.mxu0 0
    %263 = vmatprep.mubr.bf16.mxu0 0
    %264 = vmatmul.mubr.bf16.gmra.mxu0 %v175
    %v265 = vpop.f32.mrf.mxu0
    %v266 = vadd.f32 0.0, %v265
    %v267 = vpop.f32.mrf.mxu0
    %v268 = vadd.f32 0.0, %v267
    %v269 = vpop.f32.mrf.mxu0
    %v270 = vpop.f32.mrf.mxu0
    %271 = vdwg.mxu0
    %v276 = vunpack.c.l.b16 %v150
    %v277 = vunpack.c.h.b16 %v150
    %v278 = vunpack.c.l.b16 %v151
    %v279 = vunpack.c.h.b16 %v151
    %v280 = vunpack.c.l.b16 %v152
    %v281 = vunpack.c.h.b16 %v152
    %v282 = vunpack.c.l.b16 %v153
    %v283 = vunpack.c.h.b16 %v153
    %v284 = vpack.c.b16 %v280, %v276
    %v285 = vpack.c.b16 %v281, %v277
    %v286 = vpack.c.b16 %v282, %v278
    %v287 = vpack.c.b16 %v283, %v279
    %vm292 = vcmask 130048
    %v294 = vsel %vm292, %v147, 0
    %296 = vmatprep.subr.bf16.mxu0 0
    %297 = vmatpush1.bf16.msra.mxu0 0
    %298 = vmatprep.subr.bf16.mxu0 0
    %299 = vmatpush1.bf16.msra.mxu0 0
    %300 = vmatprep.subr.bf16.mxu0 0
    %301 = vmatpush1.bf16.msra.mxu0 0
    %302 = vmatprep.subr.bf16.mxu0 0
    %303 = vmatpush1.bf16.msra.mxu0 0
    %304 = vmatprep.subr.bf16.mxu0 0
    %305 = vmatpush1.bf16.msra.mxu0 0
    %306 = vmatprep.subr.bf16.mxu0 0
    %307 = vmatpush1.bf16.msra.mxu0 0
    %308 = vmatprep.subr.bf16.mxu0 0
    %309 = vmatpush1.bf16.msra.mxu0 0
    %310 = vmatprep.subr.bf16.mxu0 %v285
    %311 = vmatpush1.bf16.msra.mxu0 %v284
    %312 = vmatprep.subr.bf16.mxu0 0
    %313 = vmatpush2.bf16.msra.mxu0 0
    %314 = vmatprep.subr.bf16.mxu0 0
    %315 = vmatpush2.bf16.msra.mxu0 0
    %316 = vmatprep.subr.bf16.mxu0 0
    %317 = vmatpush2.bf16.msra.mxu0 0
    %318 = vmatprep.subr.bf16.mxu0 0
    %319 = vmatpush2.bf16.msra.mxu0 0
    %320 = vmatprep.subr.bf16.mxu0 0
    %321 = vmatpush2.bf16.msra.mxu0 0
    %322 = vmatprep.subr.bf16.mxu0 0
    %323 = vmatpush2.bf16.msra.mxu0 0
    %324 = vmatprep.subr.bf16.mxu0 0
    %325 = vmatpush2.bf16.msra.mxu0 0
    %326 = vmatprep.subr.bf16.mxu0 0
    %327 = vmatpush2.bf16.msra.mxu0 0
    %328 = vmatprep.mubr.bf16.mxu0 0
    %329 = vmatmul.mubr.bf16.gmra.mxu0 %v294
    %v330 = vpop.f32.mrf.mxu0
    %v331 = vadd.f32 %v225, %v330
    %v332 = vpop.f32.mrf.mxu0
    %v333 = vadd.f32 %v227, %v332
    %v334 = vpop.f32.mrf.mxu0
    %v335 = vpop.f32.mrf.mxu0
    %336 = vdwg.mxu0
    %337 = vmatprep.subr.bf16.mxu0 0
    %338 = vmatpush1.bf16.msra.mxu0 0
    %339 = vmatprep.subr.bf16.mxu0 0
    %340 = vmatpush1.bf16.msra.mxu0 0
    %341 = vmatprep.subr.bf16.mxu0 0
    %342 = vmatpush1.bf16.msra.mxu0 0
    %343 = vmatprep.subr.bf16.mxu0 0
    %344 = vmatpush1.bf16.msra.mxu0 0
    %345 = vmatprep.subr.bf16.mxu0 0
    %346 = vmatpush1.bf16.msra.mxu0 0
    %347 = vmatprep.subr.bf16.mxu0 0
    %348 = vmatpush1.bf16.msra.mxu0 0
    %349 = vmatprep.subr.bf16.mxu0 0
    %350 = vmatpush1.bf16.msra.mxu0 0
    %351 = vmatprep.subr.bf16.mxu0 %v287
    %352 = vmatpush1.bf16.msra.mxu0 %v286
    %353 = vmatprep.subr.bf16.mxu0 0
    %354 = vmatpush2.bf16.msra.mxu0 0
    %355 = vmatprep.subr.bf16.mxu0 0
    %356 = vmatpush2.bf16.msra.mxu0 0
    %357 = vmatprep.subr.bf16.mxu0 0
    %358 = vmatpush2.bf16.msra.mxu0 0
    %359 = vmatprep.subr.bf16.mxu0 0
    %360 = vmatpush2.bf16.msra.mxu0 0
    %361 = vmatprep.subr.bf16.mxu0 0
    %362 = vmatpush2.bf16.msra.mxu0 0
    %363 = vmatprep.subr.bf16.mxu0 0
    %364 = vmatpush2.bf16.msra.mxu0 0
    %365 = vmatprep.subr.bf16.mxu0 0
    %366 = vmatpush2.bf16.msra.mxu0 0
    %367 = vmatprep.subr.bf16.mxu0 0
    %368 = vmatpush2.bf16.msra.mxu0 0
    %369 = vmatprep.mubr.bf16.mxu0 0
    %370 = vmatmul.mubr.bf16.gmra.mxu0 %v294
    %v371 = vpop.f32.mrf.mxu0
    %v372 = vadd.f32 %v266, %v371
    %v373 = vpop.f32.mrf.mxu0
    %v374 = vadd.f32 %v268, %v373
    %v375 = vpop.f32.mrf.mxu0
    %v376 = vpop.f32.mrf.mxu0
    %377 = vdwg.mxu0
    %v378 = vld [vmem:[%s4] sm:$0xf]
    %v380 = vlaneseq
    %v381 = vshrl.u32 %v380, 7
    %v382 = vsub.s32 0, %v381
    %v383 = vrot.slane %v378, %v382
    %v384 = vlaneseq
    %v385 = vshrl.u32 %v384, 7
    %v386 = vsub.s32 1, %v385
    %v387 = vrot.slane %v378, %v386
    %v388 = vlaneseq
    %v389 = vshrl.u32 %v388, 7
    %v390 = vsub.s32 2, %v389
    %v391 = vrot.slane %v378, %v390
    %v392 = vlaneseq
    %v393 = vshrl.u32 %v392, 7
    %v394 = vsub.s32 3, %v393
    %v395 = vrot.slane %v378, %v394
    %v400 = vadd.f32 %v331, %v383
    %v401 = vadd.f32 %v333, %v387
    %v402 = vadd.f32 %v372, %v391
    %v403 = vadd.f32 %v374, %v395
    %v404 = vmax.f32 %v400, 0.0
    %v405 = vmax.f32 %v401, 0.0
    %v406 = vmax.f32 %v402, 0.0
    %v407 = vmax.f32 %v403, 0.0
    %v408 = vpack.c.bf16 %v404, %v404
    %v409 = vpack.c.bf16 %v405, %v405
    %v410 = vpack.c.bf16 %v406, %v406
    %v411 = vpack.c.bf16 %v407, %v407
    %v412 = vld [vmem:[#allocation10] sm:$0xff]
    %v413 = vld [vmem:[#allocation10 + $0x8] sm:$0xff]
    %v414 = vld [vmem:[#allocation10 + $0x10] sm:$0xff]
    %v415 = vld [vmem:[#allocation10 + $0x18] sm:$0xff]
    %v416 = vld [vmem:[#allocation10 + $0x20] sm:$0xff]
    %v417 = vld [vmem:[#allocation10 + $0x28] sm:$0xff]
    %v418 = vld [vmem:[#allocation10 + $0x30] sm:$0xff]
    %v419 = vld [vmem:[#allocation10 + $0x38] sm:$0xff]
    %v420 = vld [vmem:[#allocation10 + $0x40] sm:$0xff]
    %v421 = vld [vmem:[#allocation10 + $0x48] sm:$0xff]
    %v422 = vld [vmem:[#allocation10 + $0x50] sm:$0xff]
    %v423 = vld [vmem:[#allocation10 + $0x58] sm:$0xff]
    %v424 = vld [vmem:[#allocation10 + $0x60] sm:$0xff]
    %v425 = vld [vmem:[#allocation10 + $0x68] sm:$0xff]
    %v426 = vld [vmem:[#allocation10 + $0x70] sm:$0xff]
    %v427 = vld [vmem:[#allocation10 + $0x78] sm:$0xff]
    %v428 = vld [vmem:[#allocation10 + $0x80] sm:$0xff]
    %v429 = vld [vmem:[#allocation10 + $0x88] sm:$0xff]
    %v430 = vld [vmem:[#allocation10 + $0x90] sm:$0xff]
    %v431 = vld [vmem:[#allocation10 + $0x98] sm:$0xff]
    %v432 = vld [vmem:[#allocation10 + $0xa0] sm:$0xff]
    %v433 = vld [vmem:[#allocation10 + $0xa8] sm:$0xff]
    %v434 = vld [vmem:[#allocation10 + $0xb0] sm:$0xff]
    %v435 = vld [vmem:[#allocation10 + $0xb8] sm:$0xff]
    %v436 = vld [vmem:[#allocation10 + $0xc0] sm:$0xff]
    %v437 = vld [vmem:[#allocation10 + $0xc8] sm:$0xff]
    %v438 = vld [vmem:[#allocation10 + $0xd0] sm:$0xff]
    %v439 = vld [vmem:[#allocation10 + $0xd8] sm:$0xff]
    %v440 = vld [vmem:[#allocation10 + $0xe0] sm:$0xff]
    %v441 = vld [vmem:[#allocation10 + $0xe8] sm:$0xff]
    %v442 = vld [vmem:[#allocation10 + $0xf0] sm:$0xff]
    %v443 = vld [vmem:[#allocation10 + $0xf8] sm:$0xff]
    %v476 = vunpack.c.l.b16 %v412
    %v477 = vunpack.c.h.b16 %v412
    %v478 = vunpack.c.l.b16 %v413
    %v479 = vunpack.c.h.b16 %v413
    %v480 = vunpack.c.l.b16 %v414
    %v481 = vunpack.c.h.b16 %v414
    %v482 = vunpack.c.l.b16 %v415
    %v483 = vunpack.c.h.b16 %v415
    %v484 = vunpack.c.l.b16 %v416
    %v485 = vunpack.c.h.b16 %v416
    %v486 = vunpack.c.l.b16 %v417
    %v487 = vunpack.c.h.b16 %v417
    %v488 = vunpack.c.l.b16 %v418
    %v489 = vunpack.c.h.b16 %v418
    %v490 = vunpack.c.l.b16 %v419
    %v491 = vunpack.c.h.b16 %v419
    %v492 = vunpack.c.l.b16 %v420
    %v493 = vunpack.c.h.b16 %v420
    %v494 = vunpack.c.l.b16 %v421
    %v495 = vunpack.c.h.b16 %v421
    %v496 = vunpack.c.l.b16 %v422
    %v497 = vunpack.c.h.b16 %v422
    %v498 = vunpack.c.l.b16 %v423
    %v499 = vunpack.c.h.b16 %v423
    %v500 = vunpack.c.l.b16 %v424
    %v501 = vunpack.c.h.b16 %v424
    %v502 = vunpack.c.l.b16 %v425
    %v503 = vunpack.c.h.b16 %v425
    %v504 = vunpack.c.l.b16 %v426
    %v505 = vunpack.c.h.b16 %v426
    %v506 = vunpack.c.l.b16 %v427
    %v507 = vunpack.c.h.b16 %v427
    %v508 = vunpack.c.l.b16 %v428
    %v509 = vunpack.c.h.b16 %v428
    %v510 = vunpack.c.l.b16 %v429
    %v511 = vunpack.c.h.b16 %v429
    %v512 = vunpack.c.l.b16 %v430
    %v513 = vunpack.c.h.b16 %v430
    %v514 = vunpack.c.l.b16 %v431
    %v515 = vunpack.c.h.b16 %v431
    %v516 = vunpack.c.l.b16 %v432
    %v517 = vunpack.c.h.b16 %v432
    %v518 = vunpack.c.l.b16 %v433
    %v519 = vunpack.c.h.b16 %v433
    %v520 = vunpack.c.l.b16 %v434
    %v521 = vunpack.c.h.b16 %v434
    %v522 = vunpack.c.l.b16 %v435
    %v523 = vunpack.c.h.b16 %v435
    %v524 = vunpack.c.l.b16 %v436
    %v525 = vunpack.c.h.b16 %v436
    %v526 = vunpack.c.l.b16 %v437
    %v527 = vunpack.c.h.b16 %v437
    %v528 = vunpack.c.l.b16 %v438
    %v529 = vunpack.c.h.b16 %v438
    %v530 = vunpack.c.l.b16 %v439
    %v531 = vunpack.c.h.b16 %v439
    %v532 = vunpack.c.l.b16 %v440
    %v533 = vunpack.c.h.b16 %v440
    %v534 = vunpack.c.l.b16 %v441
    %v535 = vunpack.c.h.b16 %v441
    %v536 = vunpack.c.l.b16 %v442
    %v537 = vunpack.c.h.b16 %v442
    %v538 = vunpack.c.l.b16 %v443
    %v539 = vunpack.c.h.b16 %v443
    %v540 = vpack.c.b16 %v478, %v476
    %v541 = vpack.c.b16 %v479, %v477
    %v542 = vpack.c.b16 %v482, %v480
    %v543 = vpack.c.b16 %v483, %v481
    %v544 = vpack.c.b16 %v486, %v484
    %v545 = vpack.c.b16 %v487, %v485
    %v546 = vpack.c.b16 %v490, %v488
    %v547 = vpack.c.b16 %v491, %v489
    %v548 = vpack.c.b16 %v494, %v492
    %v549 = vpack.c.b16 %v495, %v493
    %v550 = vpack.c.b16 %v498, %v496
    %v551 = vpack.c.b16 %v499, %v497
    %v552 = vpack.c.b16 %v502, %v500
    %v553 = vpack.c.b16 %v503, %v501
    %v554 = vpack.c.b16 %v506, %v504
    %v555 = vpack.c.b16 %v507, %v505
    %v556 = vpack.c.b16 %v510, %v508
    %v557 = vpack.c.b16 %v511, %v509
    %v558 = vpack.c.b16 %v514, %v512
    %v559 = vpack.c.b16 %v515, %v513
    %v560 = vpack.c.b16 %v518, %v516
    %v561 = vpack.c.b16 %v519, %v517
    %v562 = vpack.c.b16 %v522, %v520
    %v563 = vpack.c.b16 %v523, %v521
    %v564 = vpack.c.b16 %v526, %v524
    %v565 = vpack.c.b16 %v527, %v525
    %v566 = vpack.c.b16 %v530, %v528
    %v567 = vpack.c.b16 %v531, %v529
    %v568 = vpack.c.b16 %v534, %v532
    %v569 = vpack.c.b16 %v535, %v533
    %v570 = vpack.c.b16 %v538, %v536
    %v571 = vpack.c.b16 %v539, %v537
    %604 = vmatprep.subr.bf16.mxu0 %v555
    %605 = vmatpush1.bf16.msra.mxu0 %v554
    %606 = vmatprep.subr.bf16.mxu0 %v553
    %607 = vmatpush1.bf16.msra.mxu0 %v552
    %608 = vmatprep.subr.bf16.mxu0 %v551
    %609 = vmatpush1.bf16.msra.mxu0 %v550
    %610 = vmatprep.subr.bf16.mxu0 %v549
    %611 = vmatpush1.bf16.msra.mxu0 %v548
    %612 = vmatprep.subr.bf16.mxu0 %v547
    %613 = vmatpush1.bf16.msra.mxu0 %v546
    %614 = vmatprep.subr.bf16.mxu0 %v545
    %615 = vmatpush1.bf16.msra.mxu0 %v544
    %616 = vmatprep.subr.bf16.mxu0 %v543
    %617 = vmatpush1.bf16.msra.mxu0 %v542
    %618 = vmatprep.subr.bf16.mxu0 %v541
    %619 = vmatpush1.bf16.msra.mxu0 %v540
    %620 = vmatprep.subr.bf16.mxu0 %v571
    %621 = vmatpush2.bf16.msra.mxu0 %v570
    %622 = vmatprep.subr.bf16.mxu0 %v569
    %623 = vmatpush2.bf16.msra.mxu0 %v568
    %624 = vmatprep.subr.bf16.mxu0 %v567
    %625 = vmatpush2.bf16.msra.mxu0 %v566
    %626 = vmatprep.subr.bf16.mxu0 %v565
    %627 = vmatpush2.bf16.msra.mxu0 %v564
    %628 = vmatprep.subr.bf16.mxu0 %v563
    %629 = vmatpush2.bf16.msra.mxu0 %v562
    %630 = vmatprep.subr.bf16.mxu0 %v561
    %631 = vmatpush2.bf16.msra.mxu0 %v560
    %632 = vmatprep.subr.bf16.mxu0 %v559
    %633 = vmatpush2.bf16.msra.mxu0 %v558
    %634 = vmatprep.subr.bf16.mxu0 %v557
    %635 = vmatpush2.bf16.msra.mxu0 %v556
    %636 = vmatprep.mubr.bf16.mxu0 %v409
    %637 = vmatmul.mubr.bf16.gmra.mxu0 %v408
    %v638 = vpop.f32.mrf.mxu0
    %v639 = vadd.f32 0.0, %v638
    %v640 = vpop.f32.mrf.mxu0
    %v641 = vadd.f32 0.0, %v640
    %v642 = vpop.f32.mrf.mxu0
    %v643 = vpop.f32.mrf.mxu0
    %644 = vdwg.mxu0
    %v645 = vld [vmem:[#allocation11] sm:$0xff]
    %v646 = vld [vmem:[#allocation11 + $0x8] sm:$0xff]
    %v647 = vld [vmem:[#allocation11 + $0x10] sm:$0xff]
    %v648 = vld [vmem:[#allocation11 + $0x18] sm:$0xff]
    %v649 = vld [vmem:[#allocation11 + $0x20] sm:$0xff]
    %v650 = vld [vmem:[#allocation11 + $0x28] sm:$0xff]
    %v651 = vld [vmem:[#allocation11 + $0x30] sm:$0xff]
    %v652 = vld [vmem:[#allocation11 + $0x38] sm:$0xff]
    %v653 = vld [vmem:[#allocation11 + $0x40] sm:$0xff]
    %v654 = vld [vmem:[#allocation11 + $0x48] sm:$0xff]
    %v655 = vld [vmem:[#allocation11 + $0x50] sm:$0xff]
    %v656 = vld [vmem:[#allocation11 + $0x58] sm:$0xff]
    %v657 = vld [vmem:[#allocation11 + $0x60] sm:$0xff]
    %v658 = vld [vmem:[#allocation11 + $0x68] sm:$0xff]
    %v659 = vld [vmem:[#allocation11 + $0x70] sm:$0xff]
    %v660 = vld [vmem:[#allocation11 + $0x78] sm:$0xff]
    %v661 = vld [vmem:[#allocation11 + $0x80] sm:$0xff]
    %v662 = vld [vmem:[#allocation11 + $0x88] sm:$0xff]
    %v663 = vld [vmem:[#allocation11 + $0x90] sm:$0xff]
    %v664 = vld [vmem:[#allocation11 + $0x98] sm:$0xff]
    %v665 = vld [vmem:[#allocation11 + $0xa0] sm:$0xff]
    %v666 = vld [vmem:[#allocation11 + $0xa8] sm:$0xff]
    %v667 = vld [vmem:[#allocation11 + $0xb0] sm:$0xff]
    %v668 = vld [vmem:[#allocation11 + $0xb8] sm:$0xff]
    %v669 = vld [vmem:[#allocation11 + $0xc0] sm:$0xff]
    %v670 = vld [vmem:[#allocation11 + $0xc8] sm:$0xff]
    %v671 = vld [vmem:[#allocation11 + $0xd0] sm:$0xff]
    %v672 = vld [vmem:[#allocation11 + $0xd8] sm:$0xff]
    %v673 = vld [vmem:[#allocation11 + $0xe0] sm:$0xff]
    %v674 = vld [vmem:[#allocation11 + $0xe8] sm:$0xff]
    %v675 = vld [vmem:[#allocation11 + $0xf0] sm:$0xff]
    %v676 = vld [vmem:[#allocation11 + $0xf8] sm:$0xff]
    %v709 = vunpack.c.l.b16 %v645
    %v710 = vunpack.c.h.b16 %v645
    %v711 = vunpack.c.l.b16 %v646
    %v712 = vunpack.c.h.b16 %v646
    %v713 = vunpack.c.l.b16 %v647
    %v714 = vunpack.c.h.b16 %v647
    %v715 = vunpack.c.l.b16 %v648
    %v716 = vunpack.c.h.b16 %v648
    %v717 = vunpack.c.l.b16 %v649
    %v718 = vunpack.c.h.b16 %v649
    %v719 = vunpack.c.l.b16 %v650
    %v720 = vunpack.c.h.b16 %v650
    %v721 = vunpack.c.l.b16 %v651
    %v722 = vunpack.c.h.b16 %v651
    %v723 = vunpack.c.l.b16 %v652
    %v724 = vunpack.c.h.b16 %v652
    %v725 = vunpack.c.l.b16 %v653
    %v726 = vunpack.c.h.b16 %v653
    %v727 = vunpack.c.l.b16 %v654
    %v728 = vunpack.c.h.b16 %v654
    %v729 = vunpack.c.l.b16 %v655
    %v730 = vunpack.c.h.b16 %v655
    %v731 = vunpack.c.l.b16 %v656
    %v732 = vunpack.c.h.b16 %v656
    %v733 = vunpack.c.l.b16 %v657
    %v734 = vunpack.c.h.b16 %v657
    %v735 = vunpack.c.l.b16 %v658
    %v736 = vunpack.c.h.b16 %v658
    %v737 = vunpack.c.l.b16 %v659
    %v738 = vunpack.c.h.b16 %v659
    %v739 = vunpack.c.l.b16 %v660
    %v740 = vunpack.c.h.b16 %v660
    %v741 = vunpack.c.l.b16 %v661
    %v742 = vunpack.c.h.b16 %v661
    %v743 = vunpack.c.l.b16 %v662
    %v744 = vunpack.c.h.b16 %v662
    %v745 = vunpack.c.l.b16 %v663
    %v746 = vunpack.c.h.b16 %v663
    %v747 = vunpack.c.l.b16 %v664
    %v748 = vunpack.c.h.b16 %v664
    %v749 = vunpack.c.l.b16 %v665
    %v750 = vunpack.c.h.b16 %v665
    %v751 = vunpack.c.l.b16 %v666
    %v752 = vunpack.c.h.b16 %v666
    %v753 = vunpack.c.l.b16 %v667
    %v754 = vunpack.c.h.b16 %v667
    %v755 = vunpack.c.l.b16 %v668
    %v756 = vunpack.c.h.b16 %v668
    %v757 = vunpack.c.l.b16 %v669
    %v758 = vunpack.c.h.b16 %v669
    %v759 = vunpack.c.l.b16 %v670
    %v760 = vunpack.c.h.b16 %v670
    %v761 = vunpack.c.l.b16 %v671
    %v762 = vunpack.c.h.b16 %v671
    %v763 = vunpack.c.l.b16 %v672
    %v764 = vunpack.c.h.b16 %v672
    %v765 = vunpack.c.l.b16 %v673
    %v766 = vunpack.c.h.b16 %v673
    %v767 = vunpack.c.l.b16 %v674
    %v768 = vunpack.c.h.b16 %v674
    %v769 = vunpack.c.l.b16 %v675
    %v770 = vunpack.c.h.b16 %v675
    %v771 = vunpack.c.l.b16 %v676
    %v772 = vunpack.c.h.b16 %v676
    %v773 = vpack.c.b16 %v711, %v709
    %v774 = vpack.c.b16 %v712, %v710
    %v775 = vpack.c.b16 %v715, %v713
    %v776 = vpack.c.b16 %v716, %v714
    %v777 = vpack.c.b16 %v719, %v717
    %v778 = vpack.c.b16 %v720, %v718
    %v779 = vpack.c.b16 %v723, %v721
    %v780 = vpack.c.b16 %v724, %v722
    %v781 = vpack.c.b16 %v727, %v725
    %v782 = vpack.c.b16 %v728, %v726
    %v783 = vpack.c.b16 %v731, %v729
    %v784 = vpack.c.b16 %v732, %v730
    %v785 = vpack.c.b16 %v735, %v733
    %v786 = vpack.c.b16 %v736, %v734
    %v787 = vpack.c.b16 %v739, %v737
    %v788 = vpack.c.b16 %v740, %v738
    %v789 = vpack.c.b16 %v743, %v741
    %v790 = vpack.c.b16 %v744, %v742
    %v791 = vpack.c.b16 %v747, %v745
    %v792 = vpack.c.b16 %v748, %v746
    %v793 = vpack.c.b16 %v751, %v749
    %v794 = vpack.c.b16 %v752, %v750
    %v795 = vpack.c.b16 %v755, %v753
    %v796 = vpack.c.b16 %v756, %v754
    %v797 = vpack.c.b16 %v759, %v757
    %v798 = vpack.c.b16 %v760, %v758
    %v799 = vpack.c.b16 %v763, %v761
    %v800 = vpack.c.b16 %v764, %v762
    %v801 = vpack.c.b16 %v767, %v765
    %v802 = vpack.c.b16 %v768, %v766
    %v803 = vpack.c.b16 %v771, %v769
    %v804 = vpack.c.b16 %v772, %v770
    %837 = vmatprep.subr.bf16.mxu0 %v788
    %838 = vmatpush1.bf16.msra.mxu0 %v787
    %839 = vmatprep.subr.bf16.mxu0 %v786
    %840 = vmatpush1.bf16.msra.mxu0 %v785
    %841 = vmatprep.subr.bf16.mxu0 %v784
    %842 = vmatpush1.bf16.msra.mxu0 %v783
    %843 = vmatprep.subr.bf16.mxu0 %v782
    %844 = vmatpush1.bf16.msra.mxu0 %v781
    %845 = vmatprep.subr.bf16.mxu0 %v780
    %846 = vmatpush1.bf16.msra.mxu0 %v779
    %847 = vmatprep.subr.bf16.mxu0 %v778
    %848 = vmatpush1.bf16.msra.mxu0 %v777
    %849 = vmatprep.subr.bf16.mxu0 %v776
    %850 = vmatpush1.bf16.msra.mxu0 %v775
    %851 = vmatprep.subr.bf16.mxu0 %v774
    %852 = vmatpush1.bf16.msra.mxu0 %v773
    %853 = vmatprep.subr.bf16.mxu0 %v804
    %854 = vmatpush2.bf16.msra.mxu0 %v803
    %855 = vmatprep.subr.bf16.mxu0 %v802
    %856 = vmatpush2.bf16.msra.mxu0 %v801
    %857 = vmatprep.subr.bf16.mxu0 %v800
    %858 = vmatpush2.bf16.msra.mxu0 %v799
    %859 = vmatprep.subr.bf16.mxu0 %v798
    %860 = vmatpush2.bf16.msra.mxu0 %v797
    %861 = vmatprep.subr.bf16.mxu0 %v796
    %862 = vmatpush2.bf16.msra.mxu0 %v795
    %863 = vmatprep.subr.bf16.mxu0 %v794
    %864 = vmatpush2.bf16.msra.mxu0 %v793
    %865 = vmatprep.subr.bf16.mxu0 %v792
    %866 = vmatpush2.bf16.msra.mxu0 %v791
    %867 = vmatprep.subr.bf16.mxu0 %v790
    %868 = vmatpush2.bf16.msra.mxu0 %v789
    %869 = vmatprep.mubr.bf16.mxu0 %v411
    %870 = vmatmul.mubr.bf16.gmra.mxu0 %v410
    %v871 = vpop.f32.mrf.mxu0
    %v872 = vadd.f32 0.0, %v871
    %v873 = vpop.f32.mrf.mxu0
    %v874 = vadd.f32 0.0, %v873
    %v875 = vpop.f32.mrf.mxu0
    %v876 = vpop.f32.mrf.mxu0
    %877 = vdwg.mxu0
    %v878 = vld [vmem:[%s7] sm:$0xf]
    %v880 = vlaneseq
    %v881 = vshrl.u32 %v880, 7
    %v882 = vsub.s32 0, %v881
    %v883 = vrot.slane %v878, %v882
    %v884 = vlaneseq
    %v885 = vshrl.u32 %v884, 7
    %v886 = vsub.s32 1, %v885
    %v887 = vrot.slane %v878, %v886
    %v888 = vlaneseq
    %v889 = vshrl.u32 %v888, 7
    %v890 = vsub.s32 2, %v889
    %v891 = vrot.slane %v878, %v890
    %v892 = vlaneseq
    %v893 = vshrl.u32 %v892, 7
    %v894 = vsub.s32 3, %v893
    %v895 = vrot.slane %v878, %v894
    %v900 = vadd.f32 %v639, %v883
    %v901 = vadd.f32 %v641, %v887
    %v902 = vadd.f32 %v872, %v891
    %v903 = vadd.f32 %v874, %v895
    %v904 = vmax.f32 %v900, 0.0
    %v905 = vmax.f32 %v901, 0.0
    %v906 = vmax.f32 %v902, 0.0
    %v907 = vmax.f32 %v903, 0.0
    %v908 = vpack.c.bf16 %v904, %v904
    %v909 = vpack.c.bf16 %v905, %v905
    %v910 = vpack.c.bf16 %v906, %v906
    %v911 = vpack.c.bf16 %v907, %v907
    %v912 = vld [vmem:[#allocation13] sm:$0xf]
    %v913 = vld [vmem:[#allocation13 + $0x4] sm:$0xf]
    %v914 = vld [vmem:[#allocation13 + $0x8] sm:$0xf]
    %v915 = vld [vmem:[#allocation13 + $0xc] sm:$0xf]
    %v916 = vld [vmem:[#allocation13 + $0x10] sm:$0xf]
    %v917 = vld [vmem:[#allocation13 + $0x14] sm:$0xf]
    %v918 = vld [vmem:[#allocation13 + $0x18] sm:$0xf]
    %v919 = vld [vmem:[#allocation13 + $0x1c] sm:$0xf]
    %v920 = vld [vmem:[#allocation13 + $0x20] sm:$0xf]
    %v921 = vld [vmem:[#allocation13 + $0x24] sm:$0xf]
    %v922 = vld [vmem:[#allocation13 + $0x28] sm:$0xf]
    %v923 = vld [vmem:[#allocation13 + $0x2c] sm:$0xf]
    %v924 = vld [vmem:[#allocation13 + $0x30] sm:$0xf]
    %v925 = vld [vmem:[#allocation13 + $0x34] sm:$0xf]
    %v926 = vld [vmem:[#allocation13 + $0x38] sm:$0xf]
    %v927 = vld [vmem:[#allocation13 + $0x3c] sm:$0xf]
    %v928 = vld [vmem:[#allocation13 + $0x40] sm:$0xf]
    %v929 = vld [vmem:[#allocation13 + $0x44] sm:$0xf]
    %v930 = vld [vmem:[#allocation13 + $0x48] sm:$0xf]
    %v931 = vld [vmem:[#allocation13 + $0x4c] sm:$0xf]
    %v932 = vld [vmem:[#allocation13 + $0x50] sm:$0xf]
    %v933 = vld [vmem:[#allocation13 + $0x54] sm:$0xf]
    %v934 = vld [vmem:[#allocation13 + $0x58] sm:$0xf]
    %v935 = vld [vmem:[#allocation13 + $0x5c] sm:$0xf]
    %v936 = vld [vmem:[#allocation13 + $0x60] sm:$0xf]
    %v937 = vld [vmem:[#allocation13 + $0x64] sm:$0xf]
    %v938 = vld [vmem:[#allocation13 + $0x68] sm:$0xf]
    %v939 = vld [vmem:[#allocation13 + $0x6c] sm:$0xf]
    %v940 = vld [vmem:[#allocation13 + $0x70] sm:$0xf]
    %v941 = vld [vmem:[#allocation13 + $0x74] sm:$0xf]
    %v942 = vld [vmem:[#allocation13 + $0x78] sm:$0xf]
    %v943 = vld [vmem:[#allocation13 + $0x7c] sm:$0xf]
    %v944 = vld [vmem:[#allocation13 + $0x80] sm:$0xf]
    %v945 = vld [vmem:[#allocation13 + $0x84] sm:$0xf]
    %v946 = vld [vmem:[#allocation13 + $0x88] sm:$0xf]
    %v947 = vld [vmem:[#allocation13 + $0x8c] sm:$0xf]
    %v948 = vld [vmem:[#allocation13 + $0x90] sm:$0xf]
    %v949 = vld [vmem:[#allocation13 + $0x94] sm:$0xf]
    %v950 = vld [vmem:[#allocation13 + $0x98] sm:$0xf]
    %v951 = vld [vmem:[#allocation13 + $0x9c] sm:$0xf]
    %v952 = vld [vmem:[#allocation13 + $0xa0] sm:$0xf]
    %v953 = vld [vmem:[#allocation13 + $0xa4] sm:$0xf]
    %v954 = vld [vmem:[#allocation13 + $0xa8] sm:$0xf]
    %v955 = vld [vmem:[#allocation13 + $0xac] sm:$0xf]
    %v956 = vld [vmem:[#allocation13 + $0xb0] sm:$0xf]
    %v957 = vld [vmem:[#allocation13 + $0xb4] sm:$0xf]
    %v958 = vld [vmem:[#allocation13 + $0xb8] sm:$0xf]
    %v959 = vld [vmem:[#allocation13 + $0xbc] sm:$0xf]
    %v960 = vld [vmem:[#allocation13 + $0xc0] sm:$0xf]
    %v961 = vld [vmem:[#allocation13 + $0xc4] sm:$0xf]
    %v962 = vld [vmem:[#allocation13 + $0xc8] sm:$0xf]
    %v963 = vld [vmem:[#allocation13 + $0xcc] sm:$0xf]
    %v964 = vld [vmem:[#allocation13 + $0xd0] sm:$0xf]
    %v965 = vld [vmem:[#allocation13 + $0xd4] sm:$0xf]
    %v966 = vld [vmem:[#allocation13 + $0xd8] sm:$0xf]
    %v967 = vld [vmem:[#allocation13 + $0xdc] sm:$0xf]
    %v968 = vld [vmem:[#allocation13 + $0xe0] sm:$0xf]
    %v969 = vld [vmem:[#allocation13 + $0xe4] sm:$0xf]
    %v970 = vld [vmem:[#allocation13 + $0xe8] sm:$0xf]
    %v971 = vld [vmem:[#allocation13 + $0xec] sm:$0xf]
    %v972 = vld [vmem:[#allocation13 + $0xf0] sm:$0xf]
    %v973 = vld [vmem:[#allocation13 + $0xf4] sm:$0xf]
    %v974 = vld [vmem:[#allocation13 + $0xf8] sm:$0xf]
    %v975 = vld [vmem:[#allocation13 + $0xfc] sm:$0xf]
    %v976 = vld [vmem:[%s9] sm:$0x1]
    %v978 = vlaneseq
    %v979 = vshrl.u32 %v978, 7
    %v980 = vsub.s32 0, %v979
    %v981 = vrot.slane %v976, %v980
    %v1047 = vunpack.c.l.b16 %v912
    %v1048 = vunpack.c.l.b16 %v913
    %v1049 = vunpack.c.l.b16 %v914
    %v1050 = vunpack.c.l.b16 %v915
    %v1051 = vunpack.c.l.b16 %v916
    %v1052 = vunpack.c.l.b16 %v917
    %v1053 = vunpack.c.l.b16 %v918
    %v1054 = vunpack.c.l.b16 %v919
    %v1055 = vunpack.c.l.b16 %v920
    %v1056 = vunpack.c.l.b16 %v921
    %v1057 = vunpack.c.l.b16 %v922
    %v1058 = vunpack.c.l.b16 %v923
    %v1059 = vunpack.c.l.b16 %v924
    %v1060 = vunpack.c.l.b16 %v925
    %v1061 = vunpack.c.l.b16 %v926
    %v1062 = vunpack.c.l.b16 %v927
    %v1063 = vunpack.c.l.b16 %v928
    %v1064 = vunpack.c.l.b16 %v929
    %v1065 = vunpack.c.l.b16 %v930
    %v1066 = vunpack.c.l.b16 %v931
    %v1067 = vunpack.c.l.b16 %v932
    %v1068 = vunpack.c.l.b16 %v933
    %v1069 = vunpack.c.l.b16 %v934
    %v1070 = vunpack.c.l.b16 %v935
    %v1071 = vunpack.c.l.b16 %v936
    %v1072 = vunpack.c.l.b16 %v937
    %v1073 = vunpack.c.l.b16 %v938
    %v1074 = vunpack.c.l.b16 %v939
    %v1075 = vunpack.c.l.b16 %v940
    %v1076 = vunpack.c.l.b16 %v941
    %v1077 = vunpack.c.l.b16 %v942
    %v1078 = vunpack.c.l.b16 %v943
    %v1079 = vunpack.c.l.b16 %v944
    %v1080 = vunpack.c.l.b16 %v945
    %v1081 = vunpack.c.l.b16 %v946
    %v1082 = vunpack.c.l.b16 %v947
    %v1083 = vunpack.c.l.b16 %v948
    %v1084 = vunpack.c.l.b16 %v949
    %v1085 = vunpack.c.l.b16 %v950
    %v1086 = vunpack.c.l.b16 %v951
    %v1087 = vunpack.c.l.b16 %v952
    %v1088 = vunpack.c.l.b16 %v953
    %v1089 = vunpack.c.l.b16 %v954
    %v1090 = vunpack.c.l.b16 %v955
    %v1091 = vunpack.c.l.b16 %v956
    %v1092 = vunpack.c.l.b16 %v957
    %v1093 = vunpack.c.l.b16 %v958
    %v1094 = vunpack.c.l.b16 %v959
    %v1095 = vunpack.c.l.b16 %v960
    %v1096 = vunpack.c.l.b16 %v961
    %v1097 = vunpack.c.l.b16 %v962
    %v1098 = vunpack.c.l.b16 %v963
    %v1099 = vunpack.c.l.b16 %v964
    %v1100 = vunpack.c.l.b16 %v965
    %v1101 = vunpack.c.l.b16 %v966
    %v1102 = vunpack.c.l.b16 %v967
    %v1103 = vunpack.c.l.b16 %v968
    %v1104 = vunpack.c.l.b16 %v969
    %v1105 = vunpack.c.l.b16 %v970
    %v1106 = vunpack.c.l.b16 %v971
    %v1107 = vunpack.c.l.b16 %v972
    %v1108 = vunpack.c.l.b16 %v973
    %v1109 = vunpack.c.l.b16 %v974
    %v1110 = vunpack.c.l.b16 %v975
    %v1111 = vpack.c.b16 %v1048, %v1047
    %v1112 = vpack.c.b16 %v1050, %v1049
    %v1113 = vpack.c.b16 %v1052, %v1051
    %v1114 = vpack.c.b16 %v1054, %v1053
    %v1115 = vpack.c.b16 %v1056, %v1055
    %v1116 = vpack.c.b16 %v1058, %v1057
    %v1117 = vpack.c.b16 %v1060, %v1059
    %v1118 = vpack.c.b16 %v1062, %v1061
    %v1119 = vpack.c.b16 %v1064, %v1063
    %v1120 = vpack.c.b16 %v1066, %v1065
    %v1121 = vpack.c.b16 %v1068, %v1067
    %v1122 = vpack.c.b16 %v1070, %v1069
    %v1123 = vpack.c.b16 %v1072, %v1071
    %v1124 = vpack.c.b16 %v1074, %v1073
    %v1125 = vpack.c.b16 %v1076, %v1075
    %v1126 = vpack.c.b16 %v1078, %v1077
    %v1127 = vpack.c.b16 %v1080, %v1079
    %v1128 = vpack.c.b16 %v1082, %v1081
    %v1129 = vpack.c.b16 %v1084, %v1083
    %v1130 = vpack.c.b16 %v1086, %v1085
    %v1131 = vpack.c.b16 %v1088, %v1087
    %v1132 = vpack.c.b16 %v1090, %v1089
    %v1133 = vpack.c.b16 %v1092, %v1091
    %v1134 = vpack.c.b16 %v1094, %v1093
    %v1135 = vpack.c.b16 %v1096, %v1095
    %v1136 = vpack.c.b16 %v1098, %v1097
    %v1137 = vpack.c.b16 %v1100, %v1099
    %v1138 = vpack.c.b16 %v1102, %v1101
    %v1139 = vpack.c.b16 %v1104, %v1103
    %v1140 = vpack.c.b16 %v1106, %v1105
    %v1141 = vpack.c.b16 %v1108, %v1107
    %v1142 = vpack.c.b16 %v1110, %v1109
    %1175 = vmatprep.subr.bf16.mxu0 0
    %1176 = vmatpush1.bf16.msra.mxu0 %v1118
    %1177 = vmatprep.subr.bf16.mxu0 0
    %1178 = vmatpush1.bf16.msra.mxu0 %v1117
    %1179 = vmatprep.subr.bf16.mxu0 0
    %1180 = vmatpush1.bf16.msra.mxu0 %v1116
    %1181 = vmatprep.subr.bf16.mxu0 0
    %1182 = vmatpush1.bf16.msra.mxu0 %v1115
    %1183 = vmatprep.subr.bf16.mxu0 0
    %1184 = vmatpush1.bf16.msra.mxu0 %v1114
    %1185 = vmatprep.subr.bf16.mxu0 0
    %1186 = vmatpush1.bf16.msra.mxu0 %v1113
    %1187 = vmatprep.subr.bf16.mxu0 0
    %1188 = vmatpush1.bf16.msra.mxu0 %v1112
    %1189 = vmatprep.subr.bf16.mxu0 0
    %1190 = vmatpush1.bf16.msra.mxu0 %v1111
    %1191 = vmatprep.subr.bf16.mxu0 0
    %1192 = vmatpush2.bf16.msra.mxu0 %v1126
    %1193 = vmatprep.subr.bf16.mxu0 0
    %1194 = vmatpush2.bf16.msra.mxu0 %v1125
    %1195 = vmatprep.subr.bf16.mxu0 0
    %1196 = vmatpush2.bf16.msra.mxu0 %v1124
    %1197 = vmatprep.subr.bf16.mxu0 0
    %1198 = vmatpush2.bf16.msra.mxu0 %v1123
    %1199 = vmatprep.subr.bf16.mxu0 0
    %1200 = vmatpush2.bf16.msra.mxu0 %v1122
    %1201 = vmatprep.subr.bf16.mxu0 0
    %1202 = vmatpush2.bf16.msra.mxu0 %v1121
    %1203 = vmatprep.subr.bf16.mxu0 0
    %1204 = vmatpush2.bf16.msra.mxu0 %v1120
    %1205 = vmatprep.subr.bf16.mxu0 0
    %1206 = vmatpush2.bf16.msra.mxu0 %v1119
    %1207 = vmatprep.mubr.bf16.mxu0 %v909
    %1208 = vmatmul.mubr.bf16.gmra.mxu0 %v908
    %v1209 = vpop.f32.mrf.mxu0
    %v1210 = vadd.f32 %v981, %v1209
    %v1211 = vpop.f32.mrf.mxu0
    %v1212 = vpop.f32.mrf.mxu0
    %v1213 = vpop.f32.mrf.mxu0
    %1214 = vdwg.mxu0
    %1215 = vmatprep.subr.bf16.mxu0 0
    %1216 = vmatpush1.bf16.msra.mxu0 %v1134
    %1217 = vmatprep.subr.bf16.mxu0 0
    %1218 = vmatpush1.bf16.msra.mxu0 %v1133
    %1219 = vmatprep.subr.bf16.mxu0 0
    %1220 = vmatpush1.bf16.msra.mxu0 %v1132
    %1221 = vmatprep.subr.bf16.mxu0 0
    %1222 = vmatpush1.bf16.msra.mxu0 %v1131
    %1223 = vmatprep.subr.bf16.mxu0 0
    %1224 = vmatpush1.bf16.msra.mxu0 %v1130
    %1225 = vmatprep.subr.bf16.mxu0 0
    %1226 = vmatpush1.bf16.msra.mxu0 %v1129
    %1227 = vmatprep.subr.bf16.mxu0 0
    %1228 = vmatpush1.bf16.msra.mxu0 %v1128
    %1229 = vmatprep.subr.bf16.mxu0 0
    %1230 = vmatpush1.bf16.msra.mxu0 %v1127
    %1231 = vmatprep.subr.bf16.mxu0 0
    %1232 = vmatpush2.bf16.msra.mxu0 %v1142
    %1233 = vmatprep.subr.bf16.mxu0 0
    %1234 = vmatpush2.bf16.msra.mxu0 %v1141
    %1235 = vmatprep.subr.bf16.mxu0 0
    %1236 = vmatpush2.bf16.msra.mxu0 %v1140
    %1237 = vmatprep.subr.bf16.mxu0 0
    %1238 = vmatpush2.bf16.msra.mxu0 %v1139
    %1239 = vmatprep.subr.bf16.mxu0 0
    %1240 = vmatpush2.bf16.msra.mxu0 %v1138
    %1241 = vmatprep.subr.bf16.mxu0 0
    %1242 = vmatpush2.bf16.msra.mxu0 %v1137
    %1243 = vmatprep.subr.bf16.mxu0 0
    %1244 = vmatpush2.bf16.msra.mxu0 %v1136
    %1245 = vmatprep.subr.bf16.mxu0 0
    %1246 = vmatpush2.bf16.msra.mxu0 %v1135
    %1247 = vmatprep.mubr.bf16.mxu0 %v911
    %1248 = vmatmul.mubr.bf16.gmra.mxu0 %v910
    %v1249 = vpop.f32.mrf.mxu0
    %v1250 = vadd.f32 %v1210, %v1249
    %v1251 = vpop.f32.mrf.mxu0
    %v1252 = vpop.f32.mrf.mxu0
    %v1253 = vpop.f32.mrf.mxu0
    %1254 = vdwg.mxu0
    %v1255 = vmax.f32 %v1250, 0.0
    %v1256 = vpack.c.bf16 %v1255, %v1255
    %v1257 = vld [vmem:[#allocation14] sm:$0xf]
    %v1258 = vld [vmem:[#allocation14 + $0x4] sm:$0xf]
    %v1259 = vld [vmem:[#allocation14 + $0x8] sm:$0xf]
    %v1260 = vld [vmem:[#allocation14 + $0xc] sm:$0xf]
    %v1261 = vld [vmem:[#allocation14 + $0x10] sm:$0xf]
    %v1262 = vld [vmem:[#allocation14 + $0x14] sm:$0xf]
    %v1263 = vld [vmem:[#allocation14 + $0x18] sm:$0xf]
    %v1264 = vld [vmem:[#allocation14 + $0x1c] sm:$0xf]
    %v1265 = vld [vmem:[#allocation14 + $0x20] sm:$0xf]
    %v1266 = vld [vmem:[#allocation14 + $0x24] sm:$0xf]
    %v1267 = vld [vmem:[#allocation14 + $0x28] sm:$0xf]
    %v1268 = vld [vmem:[#allocation14 + $0x2c] sm:$0xf]
    %v1269 = vld [vmem:[#allocation14 + $0x30] sm:$0xf]
    %v1270 = vld [vmem:[#allocation14 + $0x34] sm:$0xf]
    %v1271 = vld [vmem:[#allocation14 + $0x38] sm:$0xf]
    %v1272 = vld [vmem:[#allocation14 + $0x3c] sm:$0xf]
    %v1273 = vld [vmem:[%s11] sm:$0x1]
    %v1275 = vlaneseq
    %v1276 = vshrl.u32 %v1275, 7
    %v1277 = vsub.s32 0, %v1276
    %v1278 = vrot.slane %v1273, %v1277
    %v1296 = vunpack.c.l.b16 %v1257
    %v1297 = vunpack.c.l.b16 %v1258
    %v1298 = vunpack.c.l.b16 %v1259
    %v1299 = vunpack.c.l.b16 %v1260
    %v1300 = vunpack.c.l.b16 %v1261
    %v1301 = vunpack.c.l.b16 %v1262
    %v1302 = vunpack.c.l.b16 %v1263
    %v1303 = vunpack.c.l.b16 %v1264
    %v1304 = vunpack.c.l.b16 %v1265
    %v1305 = vunpack.c.l.b16 %v1266
    %v1306 = vunpack.c.l.b16 %v1267
    %v1307 = vunpack.c.l.b16 %v1268
    %v1308 = vunpack.c.l.b16 %v1269
    %v1309 = vunpack.c.l.b16 %v1270
    %v1310 = vunpack.c.l.b16 %v1271
    %v1311 = vunpack.c.l.b16 %v1272
    %v1312 = vpack.c.b16 %v1297, %v1296
    %v1313 = vpack.c.b16 %v1299, %v1298
    %v1314 = vpack.c.b16 %v1301, %v1300
    %v1315 = vpack.c.b16 %v1303, %v1302
    %v1316 = vpack.c.b16 %v1305, %v1304
    %v1317 = vpack.c.b16 %v1307, %v1306
    %v1318 = vpack.c.b16 %v1309, %v1308
    %v1319 = vpack.c.b16 %v1311, %v1310
    %1328 = vmatprep.subr.bf16.mxu0 0
    %1329 = vmatpush1.bf16.msra.mxu0 %v1319
    %1330 = vmatprep.subr.bf16.mxu0 0
    %1331 = vmatpush1.bf16.msra.mxu0 %v1318
    %1332 = vmatprep.subr.bf16.mxu0 0
    %1333 = vmatpush1.bf16.msra.mxu0 %v1317
    %1334 = vmatprep.subr.bf16.mxu0 0
    %1335 = vmatpush1.bf16.msra.mxu0 %v1316
    %1336 = vmatprep.subr.bf16.mxu0 0
    %1337 = vmatpush1.bf16.msra.mxu0 %v1315
    %1338 = vmatprep.subr.bf16.mxu0 0
    %1339 = vmatpush1.bf16.msra.mxu0 %v1314
    %1340 = vmatprep.subr.bf16.mxu0 0
    %1341 = vmatpush1.bf16.msra.mxu0 %v1313
    %1342 = vmatprep.subr.bf16.mxu0 0
    %1343 = vmatpush1.bf16.msra.mxu0 %v1312
    %1344 = vmatprep.subr.bf16.mxu0 0
    %1345 = vmatpush2.bf16.msra.mxu0 0
    %1346 = vmatprep.subr.bf16.mxu0 0
    %1347 = vmatpush2.bf16.msra.mxu0 0
    %1348 = vmatprep.subr.bf16.mxu0 0
    %1349 = vmatpush2.bf16.msra.mxu0 0
    %1350 = vmatprep.subr.bf16.mxu0 0
    %1351 = vmatpush2.bf16.msra.mxu0 0
    %1352 = vmatprep.subr.bf16.mxu0 0
    %1353 = vmatpush2.bf16.msra.mxu0 0
    %1354 = vmatprep.subr.bf16.mxu0 0
    %1355 = vmatpush2.bf16.msra.mxu0 0
    %1356 = vmatprep.subr.bf16.mxu0 0
    %1357 = vmatpush2.bf16.msra.mxu0 0
    %1358 = vmatprep.subr.bf16.mxu0 0
    %1359 = vmatpush2.bf16.msra.mxu0 0
    %1360 = vmatprep.mubr.bf16.mxu0 0
    %1361 = vmatmul.mubr.bf16.gmra.mxu0 %v1256
    %v1362 = vpop.f32.mrf.mxu0
    %v1363 = vadd.f32 %v1278, %v1362
    %v1364 = vpop.f32.mrf.mxu0
    %v1365 = vpop.f32.mrf.mxu0
    %v1366 = vpop.f32.mrf.mxu0
    %1367 = vdwg.mxu0
    %1368 = vst [vmem:[#allocation16] sm:$0x3] %v1363
    // Predicated region
    $region82: #{tpu_custom_call.1} parent=1 // pred_check
      _
    $region83: #{tpu_custom_call.1} parent=1 // pred_check_branch
      %1370 = sbr.rel (0) target = $region85
    $region84: #{tpu_custom_call.1} parent=1 // pred_region
      %s1372 = ssub.s32 32, 32
      %1373 = vsyncadd [#allocation4], %s1372
      %s1375 = sshll.u32 [#allocation16], 4
      %s1376 = int_to_ptr.vmem [resolvable:$true] %s1375
      %1378 = dma.vmem_to_hbm [thread:$0]  %s1376, 32, %s12, [#allocation4]
    $region85: #{tpu_custom_call.1} parent=1 // pred_fallthru
      _
    // Predicated region
    $region86: #{tpu_custom_call.1} parent=1 // pred_check
      _
    $region87: #{tpu_custom_call.1} parent=1 // pred_check_branch
      %1380 = sbr.rel (0) target = $region89
    $region88: #{tpu_custom_call.1} parent=1 // pred_region
      %1381 = dma.done [#allocation4], 32
    $region89: #{tpu_custom_call.1} parent=1 // pred_fallthru
      _
    %1382 = vsyncpa [#allocation3], 1
    %1383 = vsyncpa [#allocation6], 1
    %1384 = vsyncpa [#allocation9], 1
    %1385 = vsyncpa [#allocation12], 1
    %1386 = vsyncpa [#allocation15], 1
    %1387 = vsyncpa [#allocation4], 1

</llo_original>
